<compile_context>
chip_gen: v6e
topology: v6e:2x2x1
jax: 0.10.0
libtpu: 0.0.40
codegen_flags: <defaults>
</compile_context>

<pallas_src>
import jax
import jax.numpy as jnp
from jax import lax
from jax.experimental import pallas as pl
from jax.experimental.pallas import tpu as pltpu

D_IN = 128
D_OUT = 128


def linear_cat_kernel(x_ref, w_ref, b_ref, o_ref):
    x = x_ref[...]                      # (TM, D_IN)        f32
    w = w_ref[...]                      # (D_OUT, D_IN)     PyTorch layout
    b = b_ref[...]                      # (1, D_OUT)

    # y = x @ W.T + b, contracting on W's *last* dim — no explicit transpose,
    # the MXU consumes W directly.
    y = lax.dot_general(
        x, w,
        dimension_numbers=(((1,), (1,)), ((), ())),
        preferred_element_type=jnp.float32,
    ) + b

    # concat((x, y), dim=1) written straight into the output tile:
    # lanes [0, 128) = x, lanes [128, 256) = y. Both stores are lane-dense.
    o_ref[:, :D_IN] = x
    o_ref[:, D_IN:] = y.astype(o_ref.dtype)


def _pick_tm(batch: int, tm_max: int = 1024) -> int:
    """Batch-tile size.

    - Small batches (< 512): one full-array block (block dim == array dim is
      always legal, even if not a multiple of 8).
    - Larger batches: at least 2 grid steps (v7x megacore), >= 256 rows per
      step for DMA efficiency, multiple of 8, capped at tm_max. The grid is
      cdiv-based, so ragged last blocks are handled by Pallas.
    """
    if batch < 2 * 256:
        return batch
    tm = min(tm_max, (batch + 1) // 2)   # guarantee >= 2 grid steps
    tm = max(256, (tm // 8) * 8)         # >= 256 rows, multiple of 8
    return tm


def model_forward(x, w, b, *, tm_max=1024):
    """x: (B, 128), w: (128, 128) PyTorch (out, in) layout, b: (128,)."""
    B = x.shape[0]
    b2 = b.reshape(1, D_OUT)

    tm = _pick_tm(B, tm_max)
    grid = (pl.cdiv(B, tm),)

    # VMEM footprint at tm=1024, double-buffered: x ~1 MiB + out ~2 MiB +
    # W/b ~0.13 MiB  => well under every generation's scoped-VMEM default,
    # so no explicit vmem_limit_bytes needed.
    return pl.pallas_call(
        linear_cat_kernel,
        out_shape=jax.ShapeDtypeStruct((B, D_IN + D_OUT), x.dtype),
        grid=grid,
        in_specs=[
            pl.BlockSpec((tm, D_IN), lambda i: (i, 0),
                         memory_space=pltpu.MemorySpace.VMEM),
            pl.BlockSpec((D_OUT, D_IN), lambda i: (0, 0),
                         memory_space=pltpu.MemorySpace.VMEM),
            pl.BlockSpec((1, D_OUT), lambda i: (0, 0),
                         memory_space=pltpu.MemorySpace.VMEM),
        ],
        out_specs=pl.BlockSpec((tm, D_IN + D_OUT), lambda i: (i, 0),
                               memory_space=pltpu.MemorySpace.VMEM),
        compiler_params=pltpu.CompilerParams(
            dimension_semantics=("parallel",)),
    )(x, w, b2)


if __name__ == "__main__":
    key = jax.random.PRNGKey(0)
    kx, kw, kb = jax.random.split(key, 3)

    # Deterministic init mimicking nn.Linear's uniform(-1/sqrt(in), 1/sqrt(in))
    bound = 1.0 / jnp.sqrt(jnp.float32(D_IN))
    w = jax.random.uniform(kw, (D_OUT, D_IN), jnp.float32, -bound, bound)
    b = jax.random.uniform(kb, (D_OUT,), jnp.float32, -bound, bound)

    # Input consistent with the module: x1 = torch.randn(2, 128)
    x = jax.random.normal(kx, (2, D_IN), jnp.float32)

    out = model_forward(x, w, b)
    out = jax.block_until_ready(out)

    # Plain-JAX reference
    ref = jnp.concatenate([x, x @ w.T + b], axis=1)
    assert out.shape == (2, D_IN + D_OUT)
    assert jnp.allclose(out, ref, atol=1e-4, rtol=1e-4)

    print("KERNEL_OK")
</pallas_src>

<mosaic_0001>
module attributes {stable_mosaic.version = 11 : i64} {
  func.func @linear_cat_kernel(%arg0: i32, %arg1: memref<2x128xf32, #tpu.memory_space<vmem>>, %arg2: memref<128x128xf32, #tpu.memory_space<vmem>>, %arg3: memref<1x128xf32, #tpu.memory_space<vmem>>, %arg4: memref<2x256xf32, #tpu.memory_space<vmem>>) attributes {dimension_semantics = [#tpu.dimension_semantics<parallel>], iteration_bounds = array<i64: 1>, scalar_prefetch = 0 : i64, scratch_operands = 0 : i64, tpu.core_type = #tpu.core_type<tc>, window_params = [{transform_indices = @transform_0, window_bounds = array<i64: 2, 128>}, {pipeline_mode = #tpu.pipeline_mode<synchronous>, transform_indices = @transform_1, window_bounds = array<i64: 128, 128>}, {pipeline_mode = #tpu.pipeline_mode<synchronous>, transform_indices = @transform_2, window_bounds = array<i64: 1, 128>}, {transform_indices = @transform_3, window_bounds = array<i64: 2, 256>}]} {
    %c0 = arith.constant 0 : index
    %c0_0 = arith.constant 0 : index
    %0 = vector.load %arg1[%c0, %c0_0] : memref<2x128xf32, #tpu.memory_space<vmem>>, vector<2x128xf32>
    %c0_1 = arith.constant 0 : index
    %c0_2 = arith.constant 0 : index
    %1 = vector.load %arg2[%c0_1, %c0_2] : memref<128x128xf32, #tpu.memory_space<vmem>>, vector<128x128xf32>
    %c0_3 = arith.constant 0 : index
    %c0_4 = arith.constant 0 : index
    %2 = vector.load %arg3[%c0_3, %c0_4] : memref<1x128xf32, #tpu.memory_space<vmem>>, vector<1x128xf32>
    %cst = arith.constant dense<0.000000e+00> : vector<2x128xf32>
    %3 = tpu.matmul %0, %1, %cst {dimension_numbers = #tpu.dot_dimension_numbers<[1], [1], [0], [0], [0, 0, 1, 0], [], []>} : vector<2x128xf32>, vector<128x128xf32>, vector<2x128xf32> -> vector<2x128xf32>
    %4 = vector.broadcast %2 : vector<1x128xf32> to vector<2x128xf32>
    %5 = arith.addf %3, %4 : vector<2x128xf32>
    %c0_5 = arith.constant 0 : index
    %c0_6 = arith.constant 0 : index
    %6 = vector.load %arg4[%c0_5, %c0_6] : memref<2x256xf32, #tpu.memory_space<vmem>>, vector<2x128xf32>
    tpu.vector_store %arg4[%c0_5, %c0_6], %0 {strides = array<i32>} : memref<2x256xf32, #tpu.memory_space<vmem>>, vector<2x128xf32>,
    %c0_7 = arith.constant 0 : index
    %c128 = arith.constant 128 : index
    %7 = vector.load %arg4[%c0_7, %c128] : memref<2x256xf32, #tpu.memory_space<vmem>>, vector<2x128xf32>
    tpu.vector_store %arg4[%c0_7, %c128], %5 {strides = array<i32>} : memref<2x256xf32, #tpu.memory_space<vmem>>, vector<2x128xf32>,
    return
  }
  func.func @transform_0(%arg0: i32) -> (i32, i32) {
    %c0_i32 = arith.constant 0 : i32
    %c0_i32_0 = arith.constant 0 : i32
    return %arg0, %c0_i32 : i32, i32
  }
  func.func @transform_1(%arg0: i32) -> (i32, i32) {
    %c0_i32 = arith.constant 0 : i32
    %c0_i32_0 = arith.constant 0 : i32
    %c0_i32_1 = arith.constant 0 : i32
    return %c0_i32, %c0_i32_0 : i32, i32
  }
  func.func @transform_2(%arg0: i32) -> (i32, i32) {
    %c0_i32 = arith.constant 0 : i32
    %c0_i32_0 = arith.constant 0 : i32
    %c0_i32_1 = arith.constant 0 : i32
    return %c0_i32, %c0_i32_0 : i32, i32
  }
  func.func @transform_3(%arg0: i32) -> (i32, i32) {
    %c0_i32 = arith.constant 0 : i32
    %c0_i32_0 = arith.constant 0 : i32
    return %arg0, %c0_i32 : i32, i32
  }
}

</mosaic_0001>

<llo_original>
// kernel: tpu_custom_call.1
$region0: #{tpu_custom_call.1}
  #allocation0 [shape = 'u32[]', space=smem, size = 0x4, offset = 0x4, fixed_abs, tag = 'smem constant byte address 0x4 - core index']
  #allocation1 [shape = 'u32[144,128]{1,0:T(1,128)}', space=vmem, size = 0x12000, scoped, tag = 'internal scratch']
  %s0 = inlined_call_operand.hbm [shape: f32[2,128], index: 0, kind: input, shape index: {}]
  %s1 = inlined_call_operand.hbm [shape: f32[128,128], index: 1, kind: input, shape index: {}]
  %s2 = inlined_call_operand.vmem [shape: f32[1,128], index: 2, kind: input, shape index: {}]
  %s3 = inlined_call_operand.hbm [shape: f32[2,256], index: 3, kind: output, shape index: {}]
  %s4 = sld [smem:[#allocation0]]
  $region30: #{tpu_custom_call.1} parent=0
    _
  %s6 = ssub.s32 1, %s4
  %s7 = scalar_select 0, %s6, %s4
  $region1: #{tpu_custom_call.1} parent=0
    #allocation2 [shape = 'u8[1024]{0}', space=vmem, size = 0x400, scoped, tag = 'input window, operand 0, single buffered']
    #allocation3 [shape = 's32[1]{0}', space=sflag, size = 0x4, scoped, tag = 'scoped memory for tpu_custom_call.1']
    #allocation4 [shape = 's32[1]{0}', space=sflag, size = 0x4, scoped, tag = 'scoped memory for tpu_custom_call.1']
    #allocation5 [shape = 'u8[65536]{0}', space=vmem, size = 0x10000, scoped, tag = 'input window, operand 1, single buffered']
    #allocation6 [shape = 's32[1]{0}', space=sflag, size = 0x4, scoped, tag = 'scoped memory for tpu_custom_call.1']
    #allocation7 [shape = 'u8[2048]{0}', space=vmem, size = 0x800, scoped, tag = 'output window, operand 0, single buffered']
    %8 = vsyncpa [#allocation3], 0
    %9 = vsyncpa [#allocation6], 0
    %10 = vsyncpa [#allocation4], 0
    // Predicated region
    $region2: #{tpu_custom_call.1} parent=1 // pred_check
      _
    $region3: #{tpu_custom_call.1} parent=1 // pred_check_branch
      %12 = sbr.rel (0) target = $region5
    $region4: #{tpu_custom_call.1} parent=1 // pred_region
      %s14 = ssub.s32 32, 32
      %15 = vsyncadd [#allocation3], %s14
      %s17 = sshll.u32 [#allocation2], 4
      %s18 = int_to_ptr.vmem [resolvable:$true] %s17
      %20 = dma.hbm_to_vmem [thread:$0]  %s0, 32, %s18, [#allocation3]
    $region5: #{tpu_custom_call.1} parent=1 // pred_fallthru
      _
    // Predicated region
    $region6: #{tpu_custom_call.1} parent=1 // pred_check
      _
    $region7: #{tpu_custom_call.1} parent=1 // pred_check_branch
      %22 = sbr.rel (0) target = $region9
    $region8: #{tpu_custom_call.1} parent=1 // pred_region
      %s24 = ssub.s32 2048, 2048
      %25 = vsyncadd [#allocation6], %s24
      %s26 = sshll.u32 [#allocation5], 4
      %s27 = int_to_ptr.vmem [resolvable:$true] %s26
      %32 = dma.hbm_to_vmem [thread:$0]  %s1, 2048, %s27, [#allocation6], 128, 128, 8
    $region9: #{tpu_custom_call.1} parent=1 // pred_fallthru
      _
    // Predicated region
    $region10: #{tpu_custom_call.1} parent=1 // pred_check
      _
    $region11: #{tpu_custom_call.1} parent=1 // pred_check_branch
      %34 = sbr.rel (0) target = $region13
    $region12: #{tpu_custom_call.1} parent=1 // pred_region
      _
    $region13: #{tpu_custom_call.1} parent=1 // pred_fallthru
      _
    // Predicated region
    $region14: #{tpu_custom_call.1} parent=1 // pred_check
      _
    $region15: #{tpu_custom_call.1} parent=1 // pred_check_branch
      %36 = sbr.rel (0) target = $region17
    $region16: #{tpu_custom_call.1} parent=1 // pred_region
      %37 = dma.done [#allocation3], 32
    $region17: #{tpu_custom_call.1} parent=1 // pred_fallthru
      _
    // Predicated region
    $region18: #{tpu_custom_call.1} parent=1 // pred_check
      _
    $region19: #{tpu_custom_call.1} parent=1 // pred_check_branch
      %39 = sbr.rel (0) target = $region21
    $region20: #{tpu_custom_call.1} parent=1 // pred_region
      %40 = dma.done [#allocation6], 2048
    $region21: #{tpu_custom_call.1} parent=1 // pred_fallthru
      _
    %v41 = vld [vmem:[#allocation2] sm:$0x3]
    %v42 = vld [vmem:[#allocation5] sm:$0xff]
    %v43 = vld [vmem:[#allocation5 + $0x8] sm:$0xff]
    %v44 = vld [vmem:[#allocation5 + $0x10] sm:$0xff]
    %v45 = vld [vmem:[#allocation5 + $0x18] sm:$0xff]
    %v46 = vld [vmem:[#allocation5 + $0x20] sm:$0xff]
    %v47 = vld [vmem:[#allocation5 + $0x28] sm:$0xff]
    %v48 = vld [vmem:[#allocation5 + $0x30] sm:$0xff]
    %v49 = vld [vmem:[#allocation5 + $0x38] sm:$0xff]
    %v50 = vld [vmem:[#allocation5 + $0x40] sm:$0xff]
    %v51 = vld [vmem:[#allocation5 + $0x48] sm:$0xff]
    %v52 = vld [vmem:[#allocation5 + $0x50] sm:$0xff]
    %v53 = vld [vmem:[#allocation5 + $0x58] sm:$0xff]
    %v54 = vld [vmem:[#allocation5 + $0x60] sm:$0xff]
    %v55 = vld [vmem:[#allocation5 + $0x68] sm:$0xff]
    %v56 = vld [vmem:[#allocation5 + $0x70] sm:$0xff]
    %v57 = vld [vmem:[#allocation5 + $0x78] sm:$0xff]
    %v58 = vld [vmem:[%s2] sm:$0x1]
    %v60 = vlaneseq
    %v61 = vshrl.u32 %v60, 7
    %v62 = vsub.s32 0, %v61
    %v63 = vrot.slane %v58, %v62
    %65 = vmatprep.subr.mxu0 0.0
    %66 = vmatpush1.xpose.msra.mxu0 %v57
    %67 = vmatprep.subr.mxu0 0.0
    %68 = vmatpush1.xpose.msra.mxu0 %v56
    %69 = vmatprep.subr.mxu0 0.0
    %70 = vmatpush1.xpose.msra.mxu0 %v55
    %71 = vmatprep.subr.mxu0 0.0
    %72 = vmatpush1.xpose.msra.mxu0 %v54
    %73 = vmatprep.subr.mxu0 0.0
    %74 = vmatpush1.xpose.msra.mxu0 %v53
    %75 = vmatprep.subr.mxu0 0.0
    %76 = vmatpush1.xpose.msra.mxu0 %v52
    %77 = vmatprep.subr.mxu0 0.0
    %78 = vmatpush1.xpose.msra.mxu0 %v51
    %79 = vmatprep.subr.mxu0 0.0
    %80 = vmatpush1.xpose.msra.mxu0 %v50
    %81 = vmatprep.subr.mxu0 0.0
    %82 = vmatpush1.xpose.msra.mxu0 %v49
    %83 = vmatprep.subr.mxu0 0.0
    %84 = vmatpush1.xpose.msra.mxu0 %v48
    %85 = vmatprep.subr.mxu0 0.0
    %86 = vmatpush1.xpose.msra.mxu0 %v47
    %87 = vmatprep.subr.mxu0 0.0
    %88 = vmatpush1.xpose.msra.mxu0 %v46
    %89 = vmatprep.subr.mxu0 0.0
    %90 = vmatpush1.xpose.msra.mxu0 %v45
    %91 = vmatprep.subr.mxu0 0.0
    %92 = vmatpush1.xpose.msra.mxu0 %v44
    %93 = vmatprep.subr.mxu0 0.0
    %94 = vmatpush1.xpose.msra.mxu0 %v43
    %95 = vmatprep.subr.mxu0 0.0
    %96 = vmatpush1.xpose.msra.mxu0 %v42
    %97 = vmatprep.subr.mxu0 0.0
    %98 = vmatpush2.xpose.msra.mxu0 0.0
    %99 = vmatprep.subr.mxu0 0.0
    %100 = vmatpush2.xpose.msra.mxu0 0.0
    %101 = vmatprep.subr.mxu0 0.0
    %102 = vmatpush2.xpose.msra.mxu0 0.0
    %103 = vmatprep.subr.mxu0 0.0
    %104 = vmatpush2.xpose.msra.mxu0 0.0
    %105 = vmatprep.subr.mxu0 0.0
    %106 = vmatpush2.xpose.msra.mxu0 0.0
    %107 = vmatprep.subr.mxu0 0.0
    %108 = vmatpush2.xpose.msra.mxu0 0.0
    %109 = vmatprep.subr.mxu0 0.0
    %110 = vmatpush2.xpose.msra.mxu0 0.0
    %111 = vmatprep.subr.mxu0 0.0
    %112 = vmatpush2.xpose.msra.mxu0 0.0
    %113 = vmatprep.subr.mxu0 0.0
    %114 = vmatpush2.xpose.msra.mxu0 0.0
    %115 = vmatprep.subr.mxu0 0.0
    %116 = vmatpush2.xpose.msra.mxu0 0.0
    %117 = vmatprep.subr.mxu0 0.0
    %118 = vmatpush2.xpose.msra.mxu0 0.0
    %119 = vmatprep.subr.mxu0 0.0
    %120 = vmatpush2.xpose.msra.mxu0 0.0
    %121 = vmatprep.subr.mxu0 0.0
    %122 = vmatpush2.xpose.msra.mxu0 0.0
    %123 = vmatprep.subr.mxu0 0.0
    %124 = vmatpush2.xpose.msra.mxu0 0.0
    %125 = vmatprep.subr.mxu0 0.0
    %126 = vmatpush2.xpose.msra.mxu0 0.0
    %127 = vmatprep.subr.mxu0 0.0
    %128 = vmatpush2.xpose.msra.mxu0 0.0
    %129 = vmatprep.mubr.f32.mxu0 0.0
    %130 = vmatmul.mubr.f32.gmra.mxu0 %v41
    %v131 = vpop.f32.mrf.mxu0
    %v132 = vadd.f32 %v63, %v131
    %v133 = vpop.f32.mrf.mxu0
    %134 = vdwg.mxu0
    %135 = vst [vmem:[#allocation7] sm:$0x3] %v41
    %136 = vst [vmem:[#allocation7 + $0x2] sm:$0x3] %v132
    // Predicated region
    $region22: #{tpu_custom_call.1} parent=1 // pred_check
      _
    $region23: #{tpu_custom_call.1} parent=1 // pred_check_branch
      %138 = sbr.rel (0) target = $region25
    $region24: #{tpu_custom_call.1} parent=1 // pred_region
      %s140 = ssub.s32 64, 64
      %141 = vsyncadd [#allocation4], %s140
      %s143 = sshll.u32 [#allocation7], 4
      %s144 = int_to_ptr.vmem [resolvable:$true] %s143
      %146 = dma.vmem_to_hbm [thread:$0]  %s144, 64, %s3, [#allocation4]
    $region25: #{tpu_custom_call.1} parent=1 // pred_fallthru
      _
    // Predicated region
    $region26: #{tpu_custom_call.1} parent=1 // pred_check
      _
    $region27: #{tpu_custom_call.1} parent=1 // pred_check_branch
      %148 = sbr.rel (0) target = $region29
    $region28: #{tpu_custom_call.1} parent=1 // pred_region
      %149 = dma.done [#allocation4], 64
    $region29: #{tpu_custom_call.1} parent=1 // pred_fallthru
      _
    %150 = vsyncpa [#allocation3], 1
    %151 = vsyncpa [#allocation6], 1
    %152 = vsyncpa [#allocation4], 1

</llo_original>
